<compile_context>
chip_gen: v6e
topology: v6e:2x2x1
jax: 0.10.0
libtpu: 0.0.40
codegen_flags: <defaults>
</compile_context>

<pallas_src>
import math

import jax
import jax.numpy as jnp
from jax.experimental import pallas as pl
from jax.experimental.pallas import tpu as pltpu


def _interp_matrix(in_size, out_size):
    """Dense (out_size, in_size) linear-interp matrix, align_corners=True, f32."""
    if out_size == 1:
        src = jnp.zeros((1,), dtype=jnp.float32)
    else:
        o = jnp.arange(out_size, dtype=jnp.float32)
        src = o * (in_size - 1) / (out_size - 1)
    i0 = jnp.clip(jnp.floor(src).astype(jnp.int32), 0, in_size - 1)
    i1 = jnp.clip(i0 + 1, 0, in_size - 1)
    w1 = src - i0.astype(jnp.float32)
    w0 = 1.0 - w1
    m = (w0[:, None] * jax.nn.one_hot(i0, in_size, dtype=jnp.float32)
         + w1[:, None] * jax.nn.one_hot(i1, in_size, dtype=jnp.float32))
    return m  # keep f32 for accuracy even if x is bf16


def _resize_kernel(x_ref, khw_ref, md_ref, o_ref):
    # x_ref:   (D,  H*W)   one (n, c) slab; resident across the column-tile axis
    # khw_ref: (H*W, TN)   column tile of kron(Mh, Mw)^T
    # md_ref:  (Do, D)     factor-scaled depth interpolation matrix (resident)
    # o_ref:   (Do, TN)    lane-dense output tile
    t1 = jnp.dot(x_ref[...], khw_ref[...], preferred_element_type=jnp.float32)
    t2 = jnp.dot(md_ref[...], t1, preferred_element_type=jnp.float32)
    o_ref[...] = t2.astype(o_ref.dtype)


def resize_transformer_block(x, factor, mode="trilinear", *, col_tile=2048):
    """Forward pass of ResizeTransformer_block for NCDHW input.

    factor < 1: x = interpolate(x); x = factor * x
    factor > 1: x = factor * x; x = interpolate(x)
    The scalar multiply commutes with the (linear) interpolation, so it is folded into
    the depth interpolation matrix in both branches; semantics match the PyTorch code.
    """
    assert mode == "trilinear"
    if factor == 1:
        return x

    N, C, D, H, W = x.shape
    Do = int(math.floor(D * factor))
    Ho = int(math.floor(H * factor))
    Wo = int(math.floor(W * factor))

    Md = _interp_matrix(D, Do) * jnp.float32(factor)   # fold scalar scale here
    Mh = _interp_matrix(H, Ho)
    Mw = _interp_matrix(W, Wo)

    HW, HoWo = H * W, Ho * Wo
    # Kronecker-combined H/W interpolation, already transposed:
    #   Khw[h*W + w, p*Wo + q] = Mh[p, h] * Mw[q, w]
    # so that  x_slab(D, H*W) @ Khw  ==  vec_rows(Mh @ x[d] @ Mw^T).
    Khw = jnp.einsum("ph,qw->hwpq", Mh, Mw).reshape(HW, HoWo)
    # TODO(synk): for very large spatial volumes the dense kron(Mh, Mw) matrix no longer
    # fits the memory budget; a windowed per-output-tile gather kernel would be needed.

    # Tile the lane-dense Ho*Wo axis so per-step VMEM stays bounded for bigger inputs.
    tn = HoWo if HoWo <= col_tile else col_tile          # col_tile is a multiple of 128
    n_col = pl.cdiv(HoWo, tn)

    NC = N * C
    x2 = x.reshape(NC, D, HW)                            # contiguous reshape (free)

    out = pl.pallas_call(
        _resize_kernel,
        out_shape=jax.ShapeDtypeStruct((NC, Do, HoWo), x.dtype),
        grid=(NC, n_col),
        in_specs=[
            pl.BlockSpec((None, D, HW), lambda i, j: (i, 0, 0)),  # x slab (resident over j)
            pl.BlockSpec((HW, tn), lambda i, j: (0, j)),          # kron(Mh, Mw)^T column tile
            pl.BlockSpec((Do, D), lambda i, j: (0, 0)),           # scaled Md (resident)
        ],
        out_specs=pl.BlockSpec((None, Do, tn), lambda i, j: (i, 0, j)),
        compiler_params=pltpu.CompilerParams(
            dimension_semantics=("parallel", "parallel"),
            vmem_limit_bytes=32 * 1024 * 1024,
        ),
    )(x2, Khw, Md)

    return out.reshape(N, C, Do, Ho, Wo)


def _reference(x, factor):
    """Pure-JAX reference (same separable formulation) for verification."""
    N, C, D, H, W = x.shape
    Do = int(math.floor(D * factor))
    Ho = int(math.floor(H * factor))
    Wo = int(math.floor(W * factor))
    Md = _interp_matrix(D, Do)
    Mh = _interp_matrix(H, Ho)
    Mw = _interp_matrix(W, Wo)
    y = jnp.einsum("od,ph,qw,ncdhw->ncopq", Md, Mh, Mw, x.astype(jnp.float32))
    return (jnp.float32(factor) * y).astype(x.dtype)


if __name__ == "__main__":
    key = jax.random.PRNGKey(0)
    # ResizeTransformer_block is typically applied to a 3-channel flow field (NCDHW).
    x = jax.random.normal(key, (2, 3, 8, 8, 8), dtype=jnp.float32)

    # Exercise both branches of the PyTorch module (factor > 1 and factor < 1).
    for factor, expected in ((2.0, (2, 3, 16, 16, 16)), (0.5, (2, 3, 4, 4, 4))):
        y = resize_transformer_block(x, factor, mode="trilinear")
        y = jax.block_until_ready(y)
        y_ref = _reference(x, factor)
        assert y.shape == expected, (y.shape, expected)
        assert jnp.allclose(y, y_ref, atol=1e-5, rtol=1e-5), float(
            jnp.max(jnp.abs(y - y_ref))
        )

    print("KERNEL_OK")
</pallas_src>

<mosaic_0001>
module attributes {stable_mosaic.version = 11 : i64} {
  func.func @_resize_kernel(%arg0: i32, %arg1: i32, %arg2: memref<1x8x64xf32, #tpu.memory_space<vmem>>, %arg3: memref<64x256xf32, #tpu.memory_space<vmem>>, %arg4: memref<16x8xf32, #tpu.memory_space<vmem>>, %arg5: memref<1x16x256xf32, #tpu.memory_space<vmem>>) attributes {dimension_semantics = [#tpu.dimension_semantics<parallel>, #tpu.dimension_semantics<parallel>], iteration_bounds = array<i64: 6, 1>, scalar_prefetch = 0 : i64, scratch_operands = 0 : i64, tpu.core_type = #tpu.core_type<tc>, window_params = [{transform_indices = @transform_0, window_bounds = array<i64: 1, 8, 64>}, {transform_indices = @transform_1, window_bounds = array<i64: 64, 256>}, {pipeline_mode = #tpu.pipeline_mode<synchronous>, transform_indices = @transform_2, window_bounds = array<i64: 16, 8>}, {transform_indices = @transform_3, window_bounds = array<i64: 1, 16, 256>}]} {
    %c0 = arith.constant 0 : index
    %c0_0 = arith.constant 0 : index
    %c0_1 = arith.constant 0 : index
    %0 = vector.load %arg2[%c0, %c0_0, %c0_1] : memref<1x8x64xf32, #tpu.memory_space<vmem>>, vector<1x8x64xf32>
    %1 = vector.shape_cast %0 : vector<1x8x64xf32> to vector<8x64xf32>
    %c0_2 = arith.constant 0 : index
    %c0_3 = arith.constant 0 : index
    %2 = vector.load %arg3[%c0_2, %c0_3] : memref<64x256xf32, #tpu.memory_space<vmem>>, vector<64x256xf32>
    %cst = arith.constant dense<0.000000e+00> : vector<8x256xf32>
    %3 = tpu.matmul %1, %2, %cst {dimension_numbers = #tpu.dot_dimension_numbers<[1], [0], [0], [1], [0, 0, 1, 1], [], []>} : vector<8x64xf32>, vector<64x256xf32>, vector<8x256xf32> -> vector<8x256xf32>
    %c0_4 = arith.constant 0 : index
    %c0_5 = arith.constant 0 : index
    %4 = vector.load %arg4[%c0_4, %c0_5] : memref<16x8xf32, #tpu.memory_space<vmem>>, vector<16x8xf32>
    %cst_6 = arith.constant dense<0.000000e+00> : vector<16x256xf32>
    %5 = tpu.matmul %4, %3, %cst_6 {dimension_numbers = #tpu.dot_dimension_numbers<[1], [0], [0], [1], [0, 0, 1, 1], [], []>} : vector<16x8xf32>, vector<8x256xf32>, vector<16x256xf32> -> vector<16x256xf32>
    %c0_7 = arith.constant 0 : index
    %c0_8 = arith.constant 0 : index
    %c0_9 = arith.constant 0 : index
    %6 = vector.load %arg5[%c0_7, %c0_8, %c0_9] : memref<1x16x256xf32, #tpu.memory_space<vmem>>, vector<1x16x256xf32>
    %7 = vector.shape_cast %6 : vector<1x16x256xf32> to vector<16x256xf32>
    %8 = vector.shape_cast %5 : vector<16x256xf32> to vector<1x16x256xf32>
    tpu.vector_store %arg5[%c0_7, %c0_8, %c0_9], %8 {strides = array<i32>} : memref<1x16x256xf32, #tpu.memory_space<vmem>>, vector<1x16x256xf32>,
    return
  }
  func.func @transform_0(%arg0: i32, %arg1: i32) -> (i32, i32, i32) {
    %c0_i32 = arith.constant 0 : i32
    %c0_i32_0 = arith.constant 0 : i32
    %c0_i32_1 = arith.constant 0 : i32
    return %arg0, %c0_i32, %c0_i32_0 : i32, i32, i32
  }
  func.func @transform_1(%arg0: i32, %arg1: i32) -> (i32, i32) {
    %c0_i32 = arith.constant 0 : i32
    %c0_i32_0 = arith.constant 0 : i32
    return %c0_i32, %arg1 : i32, i32
  }
  func.func @transform_2(%arg0: i32, %arg1: i32) -> (i32, i32) {
    %c0_i32 = arith.constant 0 : i32
    %c0_i32_0 = arith.constant 0 : i32
    %c0_i32_1 = arith.constant 0 : i32
    return %c0_i32, %c0_i32_0 : i32, i32
  }
  func.func @transform_3(%arg0: i32, %arg1: i32) -> (i32, i32, i32) {
    %c0_i32 = arith.constant 0 : i32
    %c0_i32_0 = arith.constant 0 : i32
    return %arg0, %c0_i32, %arg1 : i32, i32, i32
  }
}

</mosaic_0001>

<llo_original>
// kernel: tpu_custom_call.1
$region0: #{tpu_custom_call.1}
  #allocation0 [shape = 'u32[]', space=smem, size = 0x4, offset = 0x4, fixed_abs, tag = 'smem constant byte address 0x4 - core index']
  #allocation1 [shape = 'u32[144,128]{1,0:T(1,128)}', space=vmem, size = 0x12000, scoped, tag = 'internal scratch']
  %s0 = inlined_call_operand.hbm [shape: f32[6,8,64], index: 0, kind: input, shape index: {}]
  %s1 = inlined_call_operand.hbm [shape: f32[64,256], index: 1, kind: input, shape index: {}]
  %s2 = inlined_call_operand.vmem [shape: f32[16,8], index: 2, kind: input, shape index: {}]
  %s3 = inlined_call_operand.hbm [shape: f32[6,16,256], index: 3, kind: output, shape index: {}]
  %s4 = sld [smem:[#allocation0]]
  $region53: #{tpu_custom_call.1} parent=0
    _
  %s6 = ssub.s32 1, %s4
  %s7 = scalar_select 0, %s6, %s4
  $region1: #{tpu_custom_call.1} parent=0
    #allocation2 [shape = 'u8[8192]{0}', space=vmem, size = 0x2000, scoped, tag = 'input window, operand 0']
    #allocation3 [shape = 's32[2]{0}', space=sflag, size = 0x8, scoped, tag = 'scoped memory for tpu_custom_call.1']
    #allocation4 [shape = 's32[2]{0}', space=sflag, size = 0x8, scoped, tag = 'scoped memory for tpu_custom_call.1']
    #allocation5 [shape = 'u8[65536]{0}', space=vmem, size = 0x10000, scoped, tag = 'input window, operand 1, single buffered']
    #allocation6 [shape = 's32[1]{0}', space=sflag, size = 0x4, scoped, tag = 'scoped memory for tpu_custom_call.1']
    #allocation7 [shape = 'u8[32768]{0}', space=vmem, size = 0x8000, scoped, tag = 'output window, operand 0']
    %8 = vsyncpa [#allocation3], 0
    %s9 = scalar_lea.sflag [#allocation3], 1
    %10 = vsyncpa %s9, 0
    %11 = vsyncpa [#allocation6], 0
    %12 = vsyncpa [#allocation4], 0
    %s13 = scalar_lea.sflag [#allocation4], 1
    %14 = vsyncpa %s13, 0
    loop: start=0, step=1, limit=8
    $region2: #{tpu_custom_call.1} parent=1 // loop_pre_header
      _
    $region3: #{tpu_custom_call.1} parent=1 // loop_header
      %s16 = sphi 0, %s20
      %p17 = scmp.ge.s32.totalorder %s16, 8
      %s23 = sphi 0, %s35
      %s24 = sphi 0, %s31
      %s25 = sphi 0, %s23
      %s26 = sphi 0, %s24
      %s27 = sphi 0, %s25
      %s28 = sphi 0, %s26
      %s38 = sphi 0, %s40
      %s41 = sphi 0, %s38
      %s42 = sphi 0, %s41
      %s58 = sphi 0, %s42
      %s64 = sphi 0, %s66
      %s67 = sphi 0, %s64
      %s68 = sphi 0, %s67
      %s84 = sphi 0, %s68
      %s88 = sphi 0, %s88
      %s90 = sphi 0, %s88
      %s91 = sphi 0, %s90
      %s105 = sphi 0, %s91
      %s113 = sphi 0, %s115
      %s116 = sphi 0, %s113
      %s117 = sphi 0, %s116
      %s133 = sphi 0, %s117
    $region4: #{tpu_custom_call.1} parent=1 // loop_header_branch
      %19 = sbr.rel (%p17) target = $region8
    $region5: #{tpu_custom_call.1} parent=1 // loop_body
      %s21 = ssub.s32 %s16, 1
      %s22 = ssub.s32 %s16, 2
      %s29 = sadd.s32 1, %s24
      %p30 = scmp.ge.s32.totalorder %s29, 1
      %s31 = scalar_select %p30, 0, %s29
      %s32 = sadd.s32 1, %s23
      %s33 = scalar_select %p30, %s32, %s23
      %p34 = scmp.ge.s32.totalorder %s33, 6
      %s35 = scalar_select %p34, 0, %s33
      %s36 = ssub.s32 %s23, %s35
      %p37 = scmp.eq.s32.totalorder %s36, 0
      %s39 = sadd.s32 %s38, 1
      %s40 = scalar_select %p37, %s38, %s39
      %p43 = pneg %p37
      %p44 = scmp.eq.s32.totalorder %s16, 5
      %p45 = por %p43, %p44
      %p46 = scmp.ne.s32.totalorder %s38, %s41
      %p47 = scmp.eq.s32.totalorder %s16, 0
      %p48 = por %p46, %p47
      %p49 = scmp.ne.s32.totalorder %s38, %s41
      %p50 = scmp.eq.s32.totalorder %s21, 5
      %p51 = por %p49, %p50
      %p52 = scmp.ne.s32.totalorder %s41, %s42
      %p53 = scmp.eq.s32.totalorder %s21, 0
      %p54 = por %p52, %p53
      %p55 = scmp.ne.s32.totalorder %s41, %s42
      %p56 = scmp.eq.s32.totalorder %s22, 5
      %p57 = por %p55, %p56
      %p59 = scmp.ne.s32.totalorder %s42, %s58
      %p60 = scmp.eq.s32.totalorder %s22, 0
      %p61 = por %p59, %p60
      %s62 = ssub.s32 %s24, %s31
      %p63 = scmp.eq.s32.totalorder %s62, 0
      %s65 = sadd.s32 %s64, 1
      %s66 = scalar_select %p63, %s64, %s65
      %p69 = pneg %p63
      %p70 = scmp.eq.s32.totalorder %s16, 5
      %p71 = por %p69, %p70
      %p72 = scmp.ne.s32.totalorder %s64, %s67
      %p73 = scmp.eq.s32.totalorder %s16, 0
      %p74 = por %p72, %p73
      %p75 = scmp.ne.s32.totalorder %s64, %s67
      %p76 = scmp.eq.s32.totalorder %s21, 5
      %p77 = por %p75, %p76
      %p78 = scmp.ne.s32.totalorder %s67, %s68
      %p79 = scmp.eq.s32.totalorder %s21, 0
      %p80 = por %p78, %p79
      %p81 = scmp.ne.s32.totalorder %s67, %s68
      %p82 = scmp.eq.s32.totalorder %s22, 5
      %p83 = por %p81, %p82
      %p85 = scmp.ne.s32.totalorder %s68, %s84
      %p86 = scmp.eq.s32.totalorder %s22, 0
      %p87 = por %p85, %p86
      %s89 = sadd.s32 %s88, 1
      %p92 = scmp.eq.s32.totalorder %s16, 5
      %p93 = scmp.ne.s32.totalorder %s88, %s90
      %p94 = scmp.eq.s32.totalorder %s16, 0
      %p95 = por %p93, %p94
      %p96 = scmp.ne.s32.totalorder %s88, %s90
      %p97 = scmp.eq.s32.totalorder %s21, 5
      %p98 = por %p96, %p97
      %p99 = scmp.ne.s32.totalorder %s90, %s91
      %p100 = scmp.eq.s32.totalorder %s21, 0
      %p101 = por %p99, %p100
      %p102 = scmp.ne.s32.totalorder %s90, %s91
      %p103 = scmp.eq.s32.totalorder %s22, 5
      %p104 = por %p102, %p103
      %p106 = scmp.ne.s32.totalorder %s91, %s105
      %p107 = scmp.eq.s32.totalorder %s22, 0
      %p108 = por %p106, %p107
      %s109 = ssub.s32 %s23, %s35
      %s110 = ssub.s32 %s24, %s31
      %s111 = sor.u32 %s109, %s110
      %p112 = scmp.eq.s32.totalorder %s111, 0
      %s114 = sadd.s32 %s113, 1
      %s115 = scalar_select %p112, %s113, %s114
      %p118 = pneg %p112
      %p119 = scmp.eq.s32.totalorder %s16, 5
      %p120 = por %p118, %p119
      %p121 = scmp.ne.s32.totalorder %s113, %s116
      %p122 = scmp.eq.s32.totalorder %s16, 0
      %p123 = por %p121, %p122
      %p124 = scmp.ne.s32.totalorder %s113, %s116
      %p125 = scmp.eq.s32.totalorder %s21, 5
      %p126 = por %p124, %p125
      %p127 = scmp.ne.s32.totalorder %s116, %s117
      %p128 = scmp.eq.s32.totalorder %s21, 0
      %p129 = por %p127, %p128
      %p130 = scmp.ne.s32.totalorder %s116, %s117
      %p131 = scmp.eq.s32.totalorder %s22, 5
      %p132 = por %p130, %p131
      %p134 = scmp.ne.s32.totalorder %s117, %s133
      %p135 = scmp.eq.s32.totalorder %s22, 0
      %p136 = por %p134, %p135
      %p137 = scmp.le.s32.totalorder 1, %s16
      %p138 = scmp.lt.s32.totalorder %s16, 7
      %p139 = pnand %p137, %p138
      %p140 = pneg %p139
      // Predicated region
      $region9: #{tpu_custom_call.1} parent=5 // pred_check
        _
      $region10: #{tpu_custom_call.1} parent=5 // pred_check_branch
        %142 = sbr.rel (%p139) target = $region12
      $region11: #{tpu_custom_call.1} parent=5 // pred_region
        %s143 = ssub.s32 %s16, 1
        // Predicated region
        $region13: #{tpu_custom_call.1} parent=11 // pred_check
          %p144 = pneg %p80
        $region14: #{tpu_custom_call.1} parent=11 // pred_check_branch
          %146 = sbr.rel (%p144) target = $region16
        $region15: #{tpu_custom_call.1} parent=11 // pred_region
          %s147 = smul.u32 2, %s26
          %s149 = ssub.s32 2048, 2048
          %150 = vsyncadd [#allocation6], %s149
          %s151 = smul.addr %s147, 128
          %s152 = scalar_lea.hbm %s1, %s151
          %s153 = sshll.u32 [#allocation5], 4
          %s154 = int_to_ptr.vmem [resolvable:$true] %s153
          %159 = dma.hbm_to_vmem [thread:$0]  %s152, 2048, %s154, [#allocation6], 256, 256, 16
        $region16: #{tpu_custom_call.1} parent=11 // pred_fallthru
          _
        // Predicated region
        $region17: #{tpu_custom_call.1} parent=11 // pred_check
          %p160 = pneg %p101
        $region18: #{tpu_custom_call.1} parent=11 // pred_check_branch
          %162 = sbr.rel (%p160) target = $region20
        $region19: #{tpu_custom_call.1} parent=11 // pred_region
          _
        $region20: #{tpu_custom_call.1} parent=11 // pred_fallthru
          _
      $region12: #{tpu_custom_call.1} parent=5 // pred_fallthru
        _
      %p163 = scmp.lt.s32.totalorder %s16, 6
      // Predicated region
      $region21: #{tpu_custom_call.1} parent=5 // pred_check
        %p164 = pneg %p163
      $region22: #{tpu_custom_call.1} parent=5 // pred_check_branch
        %166 = sbr.rel (%p164) target = $region24
      $region23: #{tpu_custom_call.1} parent=5 // pred_region
        // Predicated region
        $region25: #{tpu_custom_call.1} parent=23 // pred_check
          %p167 = pneg %p48
        $region26: #{tpu_custom_call.1} parent=23 // pred_check_branch
          %169 = sbr.rel (%p167) target = $region28
        $region27: #{tpu_custom_call.1} parent=23 // pred_region
          %s170 = sand.u32 %s38, 1
          %s171 = scalar_lea.sflag [#allocation3], %s170
          %s172 = sand.u32 %s38, 1
          %s173 = smul.addr %s172, 8
          %s174 = scalar_lea.vmem [#allocation2], %s173
          %s176 = ssub.s32 128, 128
          %177 = vsyncadd %s171, %s176
          %s178 = smul.addr %s23, 128
          %s179 = scalar_lea.hbm %s0, %s178
          %s181 = sshll.u32 %s174, 4
          %s182 = int_to_ptr.vmem [resolvable:$true] %s181
          %184 = dma.hbm_to_vmem [thread:$0]  %s179, 128, %s182, %s171
        $region28: #{tpu_custom_call.1} parent=23 // pred_fallthru
          _
      $region24: #{tpu_custom_call.1} parent=5 // pred_fallthru
        _
      %p185 = scmp.le.s32.totalorder 1, %s16
      %p186 = scmp.lt.s32.totalorder %s16, 7
      %p187 = pnand %p185, %p186
      %p188 = pneg %p187
      // Predicated region
      $region29: #{tpu_custom_call.1} parent=5 // pred_check
        _
      $region30: #{tpu_custom_call.1} parent=5 // pred_check_branch
        %190 = sbr.rel (%p187) target = $region32
      $region31: #{tpu_custom_call.1} parent=5 // pred_region
        %s191 = ssub.s32 %s16, 1
        %s192 = sand.u32 %s41, 1
        %s193 = scalar_lea.sflag [#allocation3], %s192
        %s194 = sand.u32 %s41, 1
        %s195 = smul.addr %s194, 8
        %s196 = scalar_lea.vmem [#allocation2], %s195
        // Predicated region
        $region33: #{tpu_custom_call.1} parent=31 // pred_check
          %p197 = pneg %p54
        $region34: #{tpu_custom_call.1} parent=31 // pred_check_branch
          %199 = sbr.rel (%p197) target = $region36
        $region35: #{tpu_custom_call.1} parent=31 // pred_region
          %200 = dma.done %s193, 128
        $region36: #{tpu_custom_call.1} parent=31 // pred_fallthru
          _
        // Predicated region
        $region37: #{tpu_custom_call.1} parent=31 // pred_check
          %p201 = pneg %p80
        $region38: #{tpu_custom_call.1} parent=31 // pred_check_branch
          %203 = sbr.rel (%p201) target = $region40
        $region39: #{tpu_custom_call.1} parent=31 // pred_region
          %204 = dma.done [#allocation6], 2048
        $region40: #{tpu_custom_call.1} parent=31 // pred_fallthru
          _
        %s205 = sand.u32 %s41, 1
        %s206 = scalar_lea.sflag [#allocation3], %s205
        %s207 = sand.u32 %s41, 1
        %s208 = smul.addr %s207, 8
        %s209 = scalar_lea.vmem [#allocation2], %s208
        %p210 = pneg %p54
        %p211 = pneg %p51
        %p212 = pneg %p80
        %p213 = pneg %p77
        %p214 = pneg %p101
        %p215 = pneg %p98
        %p216 = pneg %p129
        %p217 = pneg %p126
        %s218 = sand.u32 %s116, 1
        %s219 = scalar_lea.sflag [#allocation4], %s218
        %s220 = sand.u32 %s116, 1
        %s221 = smul.addr %s220, 32
        %s222 = scalar_lea.vmem [#allocation7], %s221
        %s223 = smul.u32 2, %s26
        %s224 = smul.u32 2, %s26
        %v225 = vld [vmem:[%s196] sm:$0xff]
        %v226 = vld [vmem:[#allocation5] sm:$0xff]
        %v227 = vld [vmem:[#allocation5 + $0x8] sm:$0xff]
        %v228 = vld [vmem:[#allocation5 + $0x10] sm:$0xff]
        %v229 = vld [vmem:[#allocation5 + $0x18] sm:$0xff]
        %v230 = vld [vmem:[#allocation5 + $0x20] sm:$0xff]
        %v231 = vld [vmem:[#allocation5 + $0x28] sm:$0xff]
        %v232 = vld [vmem:[#allocation5 + $0x30] sm:$0xff]
        %v233 = vld [vmem:[#allocation5 + $0x38] sm:$0xff]
        %v234 = vld [vmem:[#allocation5 + $0x40] sm:$0xff]
        %v235 = vld [vmem:[#allocation5 + $0x48] sm:$0xff]
        %v236 = vld [vmem:[#allocation5 + $0x50] sm:$0xff]
        %v237 = vld [vmem:[#allocation5 + $0x58] sm:$0xff]
        %v238 = vld [vmem:[#allocation5 + $0x60] sm:$0xff]
        %v239 = vld [vmem:[#allocation5 + $0x68] sm:$0xff]
        %v240 = vld [vmem:[#allocation5 + $0x70] sm:$0xff]
        %v241 = vld [vmem:[#allocation5 + $0x78] sm:$0xff]
        %vm242 = vcmask 523264
        %v244 = vsel %vm242, %v225, 0
        %246 = vmatprep.subr.mxu0 0.0
        %247 = vmatpush1.msra.mxu0 0.0
        %248 = vmatprep.subr.mxu0 0.0
        %249 = vmatpush1.msra.mxu0 0.0
        %250 = vmatprep.subr.mxu0 0.0
        %251 = vmatpush1.msra.mxu0 0.0
        %252 = vmatprep.subr.mxu0 0.0
        %253 = vmatpush1.msra.mxu0 0.0
        %254 = vmatprep.subr.mxu0 0.0
        %255 = vmatpush1.msra.mxu0 0.0
        %256 = vmatprep.subr.mxu0 0.0
        %257 = vmatpush1.msra.mxu0 0.0
        %258 = vmatprep.subr.mxu0 0.0
        %259 = vmatpush1.msra.mxu0 0.0
        %260 = vmatprep.subr.mxu0 0.0
        %261 = vmatpush1.msra.mxu0 0.0
        %262 = vmatprep.subr.mxu0 %v241
        %263 = vmatpush1.msra.mxu0 %v240
        %264 = vmatprep.subr.mxu0 %v239
        %265 = vmatpush1.msra.mxu0 %v238
        %266 = vmatprep.subr.mxu0 %v237
        %267 = vmatpush1.msra.mxu0 %v236
        %268 = vmatprep.subr.mxu0 %v235
        %269 = vmatpush1.msra.mxu0 %v234
        %270 = vmatprep.subr.mxu0 %v233
        %271 = vmatpush1.msra.mxu0 %v232
        %272 = vmatprep.subr.mxu0 %v231
        %273 = vmatpush1.msra.mxu0 %v230
        %274 = vmatprep.subr.mxu0 %v229
        %275 = vmatpush1.msra.mxu0 %v228
        %276 = vmatprep.subr.mxu0 %v227
        %277 = vmatpush1.msra.mxu0 %v226
        %278 = vmatprep.subr.mxu0 0.0
        %279 = vmatpush2.msra.mxu0 0.0
        %280 = vmatprep.subr.mxu0 0.0
        %281 = vmatpush2.msra.mxu0 0.0
        %282 = vmatprep.subr.mxu0 0.0
        %283 = vmatpush2.msra.mxu0 0.0
        %284 = vmatprep.subr.mxu0 0.0
        %285 = vmatpush2.msra.mxu0 0.0
        %286 = vmatprep.subr.mxu0 0.0
        %287 = vmatpush2.msra.mxu0 0.0
        %288 = vmatprep.subr.mxu0 0.0
        %289 = vmatpush2.msra.mxu0 0.0
        %290 = vmatprep.subr.mxu0 0.0
        %291 = vmatpush2.msra.mxu0 0.0
        %292 = vmatprep.subr.mxu0 0.0
        %293 = vmatpush2.msra.mxu0 0.0
        %294 = vmatprep.subr.mxu0 0.0
        %295 = vmatpush2.msra.mxu0 0.0
        %296 = vmatprep.subr.mxu0 0.0
        %297 = vmatpush2.msra.mxu0 0.0
        %298 = vmatprep.subr.mxu0 0.0
        %299 = vmatpush2.msra.mxu0 0.0
        %300 = vmatprep.subr.mxu0 0.0
        %301 = vmatpush2.msra.mxu0 0.0
        %302 = vmatprep.subr.mxu0 0.0
        %303 = vmatpush2.msra.mxu0 0.0
        %304 = vmatprep.subr.mxu0 0.0
        %305 = vmatpush2.msra.mxu0 0.0
        %306 = vmatprep.subr.mxu0 0.0
        %307 = vmatpush2.msra.mxu0 0.0
        %308 = vmatprep.subr.mxu0 0.0
        %309 = vmatpush2.msra.mxu0 0.0
        %310 = vmatprep.mubr.f32.mxu0 0.0
        %311 = vmatmul.mubr.f32.gmra.mxu0 %v244
        %v312 = vpop.f32.mrf.mxu0
        %v313 = vadd.f32 0.0, %v312
        %v314 = vpop.f32.mrf.mxu0
        %v315 = vadd.f32 0.0, %v314
        %316 = vdwg.mxu0
        %v317 = vld [vmem:[%s2] sm:$0xff]
        %v318 = vld [vmem:[%s2 + $0x8] sm:$0xff]
        %vm319 = vcmask 64512
        %v321 = vsel %vm319, %v317, 0
        %v324 = vsel %vm319, %v318, 0
        %326 = vmatprep.subr.mxu0 0.0
        %327 = vmatpush1.msra.mxu0 0.0
        %328 = vmatprep.subr.mxu0 0.0
        %329 = vmatpush1.msra.mxu0 0.0
        %330 = vmatprep.subr.mxu0 0.0
        %331 = vmatpush1.msra.mxu0 0.0
        %332 = vmatprep.subr.mxu0 0.0
        %333 = vmatpush1.msra.mxu0 0.0
        %334 = vmatprep.subr.mxu0 0.0
        %335 = vmatpush1.msra.mxu0 0.0
        %336 = vmatprep.subr.mxu0 0.0
        %337 = vmatpush1.msra.mxu0 0.0
        %338 = vmatprep.subr.mxu0 0.0
        %339 = vmatpush1.msra.mxu0 0.0
        %340 = vmatprep.subr.mxu0 0.0
        %341 = vmatpush1.msra.mxu0 0.0
        %342 = vmatprep.subr.mxu0 0.0
        %343 = vmatpush1.msra.mxu0 0.0
        %344 = vmatprep.subr.mxu0 0.0
        %345 = vmatpush1.msra.mxu0 0.0
        %346 = vmatprep.subr.mxu0 0.0
        %347 = vmatpush1.msra.mxu0 0.0
        %348 = vmatprep.subr.mxu0 0.0
        %349 = vmatpush1.msra.mxu0 0.0
        %350 = vmatprep.subr.mxu0 0.0
        %351 = vmatpush1.msra.mxu0 0.0
        %352 = vmatprep.subr.mxu0 0.0
        %353 = vmatpush1.msra.mxu0 0.0
        %354 = vmatprep.subr.mxu0 0.0
        %355 = vmatpush1.msra.mxu0 0.0
        %356 = vmatprep.subr.mxu0 %v315
        %357 = vmatpush1.msra.mxu0 %v313
        %358 = vmatprep.subr.mxu0 0.0
        %359 = vmatpush2.msra.mxu0 0.0
        %360 = vmatprep.subr.mxu0 0.0
        %361 = vmatpush2.msra.mxu0 0.0
        %362 = vmatprep.subr.mxu0 0.0
        %363 = vmatpush2.msra.mxu0 0.0
        %364 = vmatprep.subr.mxu0 0.0
        %365 = vmatpush2.msra.mxu0 0.0
        %366 = vmatprep.subr.mxu0 0.0
        %367 = vmatpush2.msra.mxu0 0.0
        %368 = vmatprep.subr.mxu0 0.0
        %369 = vmatpush2.msra.mxu0 0.0
        %370 = vmatprep.subr.mxu0 0.0
        %371 = vmatpush2.msra.mxu0 0.0
        %372 = vmatprep.subr.mxu0 0.0
        %373 = vmatpush2.msra.mxu0 0.0
        %374 = vmatprep.subr.mxu0 0.0
        %375 = vmatpush2.msra.mxu0 0.0
        %376 = vmatprep.subr.mxu0 0.0
        %377 = vmatpush2.msra.mxu0 0.0
        %378 = vmatprep.subr.mxu0 0.0
        %379 = vmatpush2.msra.mxu0 0.0
        %380 = vmatprep.subr.mxu0 0.0
        %381 = vmatpush2.msra.mxu0 0.0
        %382 = vmatprep.subr.mxu0 0.0
        %383 = vmatpush2.msra.mxu0 0.0
        %384 = vmatprep.subr.mxu0 0.0
        %385 = vmatpush2.msra.mxu0 0.0
        %386 = vmatprep.subr.mxu0 0.0
        %387 = vmatpush2.msra.mxu0 0.0
        %388 = vmatprep.subr.mxu0 0.0
        %389 = vmatpush2.msra.mxu0 0.0
        %390 = vmatprep.mubr.f32.mxu0 0.0
        %391 = vmatmul.mubr.f32.gmra.mxu0 %v321
        %v392 = vpop.f32.mrf.mxu0
        %v393 = vadd.f32 0.0, %v392
        %v394 = vpop.f32.mrf.mxu0
        %v395 = vadd.f32 0.0, %v394
        %396 = vmatprep.mubr.f32.mxu0 0.0
        %397 = vmatmul.mubr.f32.gmra.mxu0 %v324
        %v398 = vpop.f32.mrf.mxu0
        %v399 = vadd.f32 0.0, %v398
        %v400 = vpop.f32.mrf.mxu0
        %v401 = vadd.f32 0.0, %v400
        %402 = vdwg.mxu0
        %403 = vst [vmem:[%s222] sm:$0xff] %v393
        %404 = vst [vmem:[%s222 + $0x8] sm:$0xff] %v395
        %405 = vst [vmem:[%s222 + $0x10] sm:$0xff] %v399
        %406 = vst [vmem:[%s222 + $0x18] sm:$0xff] %v401
        %s407 = sand.u32 %s116, 1
        %s408 = scalar_lea.sflag [#allocation4], %s407
        %s409 = sand.u32 %s116, 1
        %s410 = smul.addr %s409, 32
        %s411 = scalar_lea.vmem [#allocation7], %s410
        // Predicated region
        $region41: #{tpu_custom_call.1} parent=31 // pred_check
          %p412 = pneg %p126
        $region42: #{tpu_custom_call.1} parent=31 // pred_check_branch
          %414 = sbr.rel (%p412) target = $region44
        $region43: #{tpu_custom_call.1} parent=31 // pred_region
          %s415 = smul.u32 2, %s26
          %s417 = ssub.s32 512, 512
          %418 = vsyncadd %s408, %s417
          %s419 = smul.addr %s25, 4
          %s420 = sadd.s32 %s415, %s419
          %s421 = smul.addr %s420, 128
          %s422 = scalar_lea.hbm %s3, %s421
          %s423 = sshll.u32 %s411, 4
          %s424 = int_to_ptr.vmem [resolvable:$true] %s423
          %429 = dma.vmem_to_hbm [thread:$0]  %s424, 512, %s422, %s408, 256, 256, 16
        $region44: #{tpu_custom_call.1} parent=31 // pred_fallthru
          _
      $region32: #{tpu_custom_call.1} parent=5 // pred_fallthru
        _
      %p430 = scmp.le.s32.totalorder 2, %s16
      // Predicated region
      $region45: #{tpu_custom_call.1} parent=5 // pred_check
        %p431 = pneg %p430
      $region46: #{tpu_custom_call.1} parent=5 // pred_check_branch
        %433 = sbr.rel (%p431) target = $region48
      $region47: #{tpu_custom_call.1} parent=5 // pred_region
        %s434 = ssub.s32 %s16, 2
        // Predicated region
        $region49: #{tpu_custom_call.1} parent=47 // pred_check
          %p435 = pneg %p132
        $region50: #{tpu_custom_call.1} parent=47 // pred_check_branch
          %437 = sbr.rel (%p435) target = $region52
        $region51: #{tpu_custom_call.1} parent=47 // pred_region
          %s438 = sand.u32 %s117, 1
          %s439 = scalar_lea.sflag [#allocation4], %s438
          %s440 = sand.u32 %s117, 1
          %s441 = smul.addr %s440, 32
          %s442 = scalar_lea.vmem [#allocation7], %s441
          %443 = dma.done %s439, 512
        $region52: #{tpu_custom_call.1} parent=47 // pred_fallthru
          _
      $region48: #{tpu_custom_call.1} parent=5 // pred_fallthru
        _
    $region6: #{tpu_custom_call.1} parent=1 // loop_footer
      %s20 = sadd.s32 1, %s16
    $region7: #{tpu_custom_call.1} parent=1 // loop_footer_branch
      %15 = sbr.rel target = $region3
    $region8: #{tpu_custom_call.1} parent=1 // loop_exit
      _
    %444 = vsyncpa [#allocation3], 1
    %s445 = scalar_lea.sflag [#allocation3], 1
    %446 = vsyncpa %s445, 1
    %447 = vsyncpa [#allocation6], 1
    %448 = vsyncpa [#allocation4], 1
    %s449 = scalar_lea.sflag [#allocation4], 1
    %450 = vsyncpa %s449, 1

</llo_original>
